<compile_context>
chip_gen: v5e
topology: v5e:2x2
jax: 0.10.0
libtpu: 0.0.40
codegen_flags: <defaults>
</compile_context>

<pallas_src>
import functools

import jax
import jax.numpy as jnp
from jax import lax
from jax.experimental import pallas as pl
from jax.experimental.pallas import tpu as pltpu


def _round_up(x, m):
    return ((x + m - 1) // m) * m


def _round_down(x, m):
    return (x // m) * m


def _int_pow(x, p):
    """x**p for a small static integer p >= 1, lowered to multiplies only."""
    r = x
    for _ in range(int(p) - 1):
        r = r * x
    return r


def _dice_kernel(pred_ref, targ_ref, num_out_ref, den_out_ref,
                 num_acc, den_acc, *, p, tile_d, acc_w, d_valid, ragged):
    """Per-row partial num/den sums over the D (lane) axis.

    Grid = (row_tiles, d_tiles); the d axis is the reduction ("arbitrary")
    axis and comes last.  The two (tile_r, acc_w) f32 scratch accumulators
    are folded to 128 lanes and stored to the lane-dense outputs at the final
    d-step; the tiny final reduction happens in the wrapper.
    """
    k = pl.program_id(1)
    nk = pl.num_programs(1)
    tile_r = num_acc.shape[0]
    n_chunks = tile_d // acc_w

    @pl.when(k == 0)
    def _():
        num_acc[...] = jnp.zeros_like(num_acc)
        den_acc[...] = jnp.zeros_like(den_acc)

    col0 = k * tile_d
    if ragged:
        lane = lax.broadcasted_iota(jnp.int32, (tile_r, acc_w), 1)

    for ci in range(n_chunks):
        lo = ci * acc_w
        x = pred_ref[:, lo:lo + acc_w].astype(jnp.float32)
        t = targ_ref[:, lo:lo + acc_w].astype(jnp.float32)
        if ragged:
            # Pallas leaves out-of-bounds block contents undefined, so mask
            # the tail columns; zeros are neutral for num and den (p > 0).
            valid = (lane + (col0 + lo)) < d_valid
            x = jnp.where(valid, x, 0.0)
            t = jnp.where(valid, t, 0.0)
        num_acc[...] = num_acc[...] + x * t
        if p == 1:
            den_acc[...] = den_acc[...] + (x + t)
        elif p == 2:
            den_acc[...] = den_acc[...] + (x * x + t * t)
        else:
            den_acc[...] = den_acc[...] + (_int_pow(x, p) + _int_pow(t, p))

    @pl.when(k == nk - 1)
    def _():
        a = num_acc[...]
        b = den_acc[...]
        na = a[:, 0:128]
        nb = b[:, 0:128]
        for ci in range(1, acc_w // 128):
            na = na + a[:, ci * 128:(ci + 1) * 128]
            nb = nb + b[:, ci * 128:(ci + 1) * 128]
        num_out_ref[...] = na          # lane-dense (tile_r, 128) store
        den_out_ref[...] = nb


def _apply_reduction(loss, reduction):
    if reduction == "mean":
        return loss.mean()
    elif reduction == "sum":
        return loss.sum()
    elif reduction == "none":
        return loss
    raise Exception("Unexpected reduction {}".format(reduction))


def binary_dice_loss(predict, target, *, smooth=1.0, p=2, reduction="mean",
                     vmem_budget_bytes=12 << 20):
    """Pallas TPU implementation of BinaryDiceLoss.forward."""
    assert predict.shape[0] == target.shape[0], \
        "predict & target batch size don't match"
    assert predict.shape == target.shape, "predict & target shapes must match"
    assert int(p) == p and int(p) >= 1, "only static integer p >= 1 supported"
    # TODO(synk): non-integer exponents (torch.pow with float p) are not
    # implemented; they would need jnp.power (EUP transcendentals).
    p = int(p)

    N = int(predict.shape[0])
    D = 1
    for s in predict.shape[1:]:
        D *= int(s)

    if D == 0:
        # num = den = smooth -> loss = 0 per sample.
        return _apply_reduction(jnp.zeros((N,), jnp.float32), reduction)

    # Sublane occupancy: reinterpret (N, D) as (N*rs, D/rs) (free, row-major)
    # so small batches fill the 8 f32 sublanes of each vreg.
    rs = 1
    if N % 8 != 0:
        for cand in (8, 4, 2):
            if D % cand == 0:
                rs = cand
                break
    rows = N * rs
    d_row = D // rs

    def _as_stream(a):
        # Keep floating dtypes native in HBM (bf16 stays bf16); only bool/int
        # inputs take a wrapper-side f32 cast (rare path).
        if not jnp.issubdtype(a.dtype, jnp.floating):
            a = a.astype(jnp.float32)
        return a.reshape(rows, d_row)

    x = _as_stream(predict)
    t = _as_stream(target)
    isz = x.dtype.itemsize + t.dtype.itemsize        # bytes per (row, col) pair

    # ---- Block sizing from an explicit VMEM budget.  Per row we need:
    #      double-buffered input columns + 2 f32 accumulators (width <= 512)
    #      + double-buffered (., 128) f32 output blocks.
    budget = int(vmem_budget_bytes)
    per_row_fixed = 2 * 512 * 4 + 2 * 2 * 128 * 4
    per_row_min_in = 2 * 128 * isz
    if rows * (per_row_min_in + per_row_fixed) <= budget:
        tile_r = rows                                 # common case: all rows
    else:
        tile_r = max(8, _round_down(
            budget // (per_row_min_in + per_row_fixed), 8))

    col_budget = budget // tile_r - per_row_fixed     # input bytes per row
    tile_d = min(
        max(128, _round_down(col_budget // (2 * isz), 128)),
        max(128, _round_down((4 << 20) // (tile_r * isz), 128)),  # ~2 MiB/block
        16384,
        _round_up(d_row, 128),
    )
    tile_d = max(tile_d, 128)
    if tile_d > 512:
        tile_d = _round_down(tile_d, 512)             # uniform 512-wide chunks
    acc_w = min(tile_d, 512)

    n_row_tiles = pl.cdiv(rows, tile_r)
    n_d_tiles = pl.cdiv(d_row, tile_d)
    ragged = bool(d_row % tile_d != 0)

    kernel = functools.partial(_dice_kernel, p=p, tile_d=tile_d, acc_w=acc_w,
                               d_valid=d_row, ragged=ragged)

    cost = pl.CostEstimate(
        flops=(2 + 2 * p) * rows * d_row,
        transcendentals=0,
        bytes_accessed=rows * d_row * isz + 2 * rows * 128 * 4,
    )

    num_out, den_out = pl.pallas_call(
        kernel,
        out_shape=(jax.ShapeDtypeStruct((rows, 128), jnp.float32),
                   jax.ShapeDtypeStruct((rows, 128), jnp.float32)),
        grid=(n_row_tiles, n_d_tiles),
        in_specs=[
            pl.BlockSpec((tile_r, tile_d), lambda r, k: (r, k)),
            pl.BlockSpec((tile_r, tile_d), lambda r, k: (r, k)),
        ],
        out_specs=(
            pl.BlockSpec((tile_r, 128), lambda r, k: (r, 0)),
            pl.BlockSpec((tile_r, 128), lambda r, k: (r, 0)),
        ),
        scratch_shapes=[pltpu.VMEM((tile_r, acc_w), jnp.float32),
                        pltpu.VMEM((tile_r, acc_w), jnp.float32)],
        compiler_params=pltpu.CompilerParams(
            dimension_semantics=("parallel", "arbitrary"),
            vmem_limit_bytes=32 << 20),
        cost_estimate=cost,
    )(x, t)

    # Tiny final combine: fold the 128 lanes and the rs sub-rows per sample.
    num = jnp.sum(num_out.reshape(N, rs * 128), axis=1) + smooth
    den = jnp.sum(den_out.reshape(N, rs * 128), axis=1) + smooth
    loss = 1.0 - num / den
    return _apply_reduction(loss, reduction)


def binary_dice_loss_ref(predict, target, *, smooth=1.0, p=2, reduction="mean"):
    """Pure-JAX reference matching the PyTorch forward."""
    N = predict.shape[0]
    pr = predict.reshape(N, -1).astype(jnp.float32)
    tg = target.reshape(N, -1).astype(jnp.float32)
    num = jnp.sum(pr * tg, axis=1) + smooth
    den = jnp.sum(pr ** p + tg ** p, axis=1) + smooth
    loss = 1.0 - num / den
    return _apply_reduction(loss, reduction)


if __name__ == "__main__":
    key = jax.random.PRNGKey(0)
    k1, k2, k3, k4, k5, k6 = jax.random.split(key, 6)

    # 1) Small (N, C, H, W) f32 case: D=1024, row split rs=8, single 128-tile.
    predict = jax.nn.sigmoid(jax.random.normal(k1, (2, 4, 16, 16), jnp.float32))
    target = jax.random.bernoulli(k2, 0.5, (2, 4, 16, 16)).astype(jnp.float32)
    out = jax.block_until_ready(binary_dice_loss(predict, target))
    ref = binary_dice_loss_ref(predict, target)
    assert abs(float(out) - float(ref)) <= 1e-4 * max(1.0, abs(float(ref))), (
        float(out), float(ref))

    # 2) Ragged D (3600 -> d_row=450, masked 512-wide tile), 'sum' reduction.
    predict2 = jax.nn.sigmoid(jax.random.normal(k3, (2, 4, 30, 30), jnp.float32))
    target2 = jax.random.bernoulli(k4, 0.5, (2, 4, 30, 30)).astype(jnp.float32)
    out2 = jax.block_until_ready(
        binary_dice_loss(predict2, target2, reduction="sum"))
    ref2 = binary_dice_loss_ref(predict2, target2, reduction="sum")
    assert abs(float(out2) - float(ref2)) <= 1e-4 * max(1.0, abs(float(ref2))), (
        float(out2), float(ref2))

    # 3) bf16 inputs stay bf16 in HBM; 'none' reduction; N=3 -> rows=24,
    #    ragged d_row=64 within a 128-wide masked tile.
    predict3 = jax.nn.sigmoid(
        jax.random.normal(k5, (3, 2, 16, 16), jnp.float32)).astype(jnp.bfloat16)
    target3 = jax.random.bernoulli(k6, 0.5, (3, 2, 16, 16)).astype(jnp.bfloat16)
    out3 = jax.block_until_ready(
        binary_dice_loss(predict3, target3, reduction="none"))
    ref3 = binary_dice_loss_ref(predict3, target3, reduction="none")
    assert out3.shape == (3,)
    assert float(jnp.max(jnp.abs(out3 - ref3))) <= 1e-3, (out3, ref3)

    print("KERNEL_OK")
</pallas_src>

<mosaic_0001>
module attributes {stable_mosaic.version = 11 : i64} {
  func.func @_dice_kernel(%arg0: i32, %arg1: i32, %arg2: memref<16x128xf32, #tpu.memory_space<vmem>>, %arg3: memref<16x128xf32, #tpu.memory_space<vmem>>, %arg4: memref<16x128xf32, #tpu.memory_space<vmem>>, %arg5: memref<16x128xf32, #tpu.memory_space<vmem>>, %arg6: memref<16x128xf32, #tpu.memory_space<vmem>>, %arg7: memref<16x128xf32, #tpu.memory_space<vmem>>) attributes {dimension_semantics = [#tpu.dimension_semantics<parallel>, #tpu.dimension_semantics<arbitrary>], iteration_bounds = array<i64: 1, 1>, scalar_prefetch = 0 : i64, scratch_operands = 2 : i64, tpu.core_type = #tpu.core_type<tc>, window_params = [{transform_indices = @transform_0, window_bounds = array<i64: 16, 128>}, {transform_indices = @transform_1, window_bounds = array<i64: 16, 128>}, {transform_indices = @transform_2, window_bounds = array<i64: 16, 128>}, {transform_indices = @transform_3, window_bounds = array<i64: 16, 128>}]} {
    %c0_i32 = arith.constant 0 : i32
    %0 = arith.cmpi eq, %arg1, %c0_i32 : i32
    %1 = arith.extui %0 : i1 to i32
    %c0_i32_0 = arith.constant 0 : i32
    %2 = arith.cmpi ne, %1, %c0_i32_0 : i32
    scf.if %2 {
      %cst = arith.constant 0.000000e+00 : f32
      %18 = vector.broadcast %cst : f32 to vector<16x128xf32>
      %c0_14 = arith.constant 0 : index
      %c0_15 = arith.constant 0 : index
      %19 = vector.load %arg6[%c0_14, %c0_15] : memref<16x128xf32, #tpu.memory_space<vmem>>, vector<16x128xf32>
      tpu.vector_store %arg6[%c0_14, %c0_15], %18 {strides = array<i32>} : memref<16x128xf32, #tpu.memory_space<vmem>>, vector<16x128xf32>,
      %cst_16 = arith.constant 0.000000e+00 : f32
      %20 = vector.broadcast %cst_16 : f32 to vector<16x128xf32>
      %c0_17 = arith.constant 0 : index
      %c0_18 = arith.constant 0 : index
      %21 = vector.load %arg7[%c0_17, %c0_18] : memref<16x128xf32, #tpu.memory_space<vmem>>, vector<16x128xf32>
      tpu.vector_store %arg7[%c0_17, %c0_18], %20 {strides = array<i32>} : memref<16x128xf32, #tpu.memory_space<vmem>>, vector<16x128xf32>,
    } else {
    }
    %c0 = arith.constant 0 : index
    %c0_1 = arith.constant 0 : index
    %3 = vector.load %arg2[%c0, %c0_1] : memref<16x128xf32, #tpu.memory_space<vmem>>, vector<16x128xf32>
    %c0_2 = arith.constant 0 : index
    %c0_3 = arith.constant 0 : index
    %4 = vector.load %arg3[%c0_2, %c0_3] : memref<16x128xf32, #tpu.memory_space<vmem>>, vector<16x128xf32>
    %c0_4 = arith.constant 0 : index
    %c0_5 = arith.constant 0 : index
    %5 = vector.load %arg6[%c0_4, %c0_5] : memref<16x128xf32, #tpu.memory_space<vmem>>, vector<16x128xf32>
    %6 = arith.mulf %3, %4 : vector<16x128xf32>
    %7 = arith.addf %5, %6 : vector<16x128xf32>
    %c0_6 = arith.constant 0 : index
    %c0_7 = arith.constant 0 : index
    %8 = vector.load %arg6[%c0_6, %c0_7] : memref<16x128xf32, #tpu.memory_space<vmem>>, vector<16x128xf32>
    tpu.vector_store %arg6[%c0_6, %c0_7], %7 {strides = array<i32>} : memref<16x128xf32, #tpu.memory_space<vmem>>, vector<16x128xf32>,
    %c0_8 = arith.constant 0 : index
    %c0_9 = arith.constant 0 : index
    %9 = vector.load %arg7[%c0_8, %c0_9] : memref<16x128xf32, #tpu.memory_space<vmem>>, vector<16x128xf32>
    %10 = arith.mulf %3, %3 : vector<16x128xf32>
    %11 = arith.mulf %4, %4 : vector<16x128xf32>
    %12 = arith.addf %10, %11 : vector<16x128xf32>
    %13 = arith.addf %9, %12 : vector<16x128xf32>
    %c0_10 = arith.constant 0 : index
    %c0_11 = arith.constant 0 : index
    %14 = vector.load %arg7[%c0_10, %c0_11] : memref<16x128xf32, #tpu.memory_space<vmem>>, vector<16x128xf32>
    tpu.vector_store %arg7[%c0_10, %c0_11], %13 {strides = array<i32>} : memref<16x128xf32, #tpu.memory_space<vmem>>, vector<16x128xf32>,
    %c0_i32_12 = arith.constant 0 : i32
    %15 = arith.cmpi eq, %arg1, %c0_i32_12 : i32
    %16 = arith.extui %15 : i1 to i32
    %c0_i32_13 = arith.constant 0 : i32
    %17 = arith.cmpi ne, %16, %c0_i32_13 : i32
    scf.if %17 {
      %c0_14 = arith.constant 0 : index
      %c0_15 = arith.constant 0 : index
      %18 = vector.load %arg6[%c0_14, %c0_15] : memref<16x128xf32, #tpu.memory_space<vmem>>, vector<16x128xf32>
      %c0_16 = arith.constant 0 : index
      %c0_17 = arith.constant 0 : index
      %19 = vector.load %arg7[%c0_16, %c0_17] : memref<16x128xf32, #tpu.memory_space<vmem>>, vector<16x128xf32>
      %c0_18 = arith.constant 0 : index
      %c0_19 = arith.constant 0 : index
      %20 = vector.load %arg4[%c0_18, %c0_19] : memref<16x128xf32, #tpu.memory_space<vmem>>, vector<16x128xf32>
      tpu.vector_store %arg4[%c0_18, %c0_19], %18 {strides = array<i32>} : memref<16x128xf32, #tpu.memory_space<vmem>>, vector<16x128xf32>,
      %c0_20 = arith.constant 0 : index
      %c0_21 = arith.constant 0 : index
      %21 = vector.load %arg5[%c0_20, %c0_21] : memref<16x128xf32, #tpu.memory_space<vmem>>, vector<16x128xf32>
      tpu.vector_store %arg5[%c0_20, %c0_21], %19 {strides = array<i32>} : memref<16x128xf32, #tpu.memory_space<vmem>>, vector<16x128xf32>,
    } else {
    }
    return
  }
  func.func @transform_0(%arg0: i32, %arg1: i32) -> (i32, i32) {
    %c0_i32 = arith.constant 0 : i32
    return %arg0, %arg1 : i32, i32
  }
  func.func @transform_1(%arg0: i32, %arg1: i32) -> (i32, i32) {
    %c0_i32 = arith.constant 0 : i32
    return %arg0, %arg1 : i32, i32
  }
  func.func @transform_2(%arg0: i32, %arg1: i32) -> (i32, i32) {
    %c0_i32 = arith.constant 0 : i32
    %c0_i32_0 = arith.constant 0 : i32
    return %arg0, %c0_i32 : i32, i32
  }
  func.func @transform_3(%arg0: i32, %arg1: i32) -> (i32, i32) {
    %c0_i32 = arith.constant 0 : i32
    %c0_i32_0 = arith.constant 0 : i32
    return %arg0, %c0_i32 : i32, i32
  }
}

</mosaic_0001>

<llo_original>
// kernel: tpu_custom_call.1
$region0: #{tpu_custom_call.1}
  #allocation0 [shape = 'u32[]', space=smem, size = 0x4, offset = 0x4, fixed_abs, tag = 'smem constant byte address 0x4 - core index']
  #allocation1 [shape = 'u32[72,128]{1,0:T(1,128)}', space=vmem, size = 0x9000, scoped, tag = 'internal scratch']
  #allocation2 [shape = 'f32[16,128]{1,0:T(8,128)}', space=vmem, size = 0x2000, scoped, tag = 'scratch operand']
  #allocation3 [shape = 'f32[16,128]{1,0:T(8,128)}', space=vmem, size = 0x2000, scoped, tag = 'scratch operand']
  %s0 = inlined_call_operand.hbm [shape: f32[16,128], index: 0, kind: input, shape index: {}]
  %s1 = inlined_call_operand.hbm [shape: f32[16,128], index: 1, kind: input, shape index: {}]
  %s2 = inlined_call_operand.hbm [shape: f32[16,128], index: 2, kind: output, shape index: {0}]
  %s3 = inlined_call_operand.hbm [shape: f32[16,128], index: 3, kind: output, shape index: {1}]
  %4 = xla_tuple %s2, %s3
  %s5 = sld [smem:[#allocation0]]
  $region42: #{tpu_custom_call.1} parent=0
    _
  %s7 = ssub.s32 1, %s5
  %s8 = scalar_select 0, %s7, %s5
  $region1: #{tpu_custom_call.1} parent=0
    #allocation4 [shape = 'u8[8192]{0}', space=vmem, size = 0x2000, scoped, tag = 'input window, operand 0, single buffered']
    #allocation5 [shape = 's32[1]{0}', space=sflag, size = 0x4, scoped, tag = 'scoped memory for tpu_custom_call.1']
    #allocation6 [shape = 's32[1]{0}', space=sflag, size = 0x4, scoped, tag = 'scoped memory for tpu_custom_call.1']
    #allocation7 [shape = 'u8[8192]{0}', space=vmem, size = 0x2000, scoped, tag = 'input window, operand 1, single buffered']
    #allocation8 [shape = 's32[1]{0}', space=sflag, size = 0x4, scoped, tag = 'scoped memory for tpu_custom_call.1']
    #allocation9 [shape = 'u8[8192]{0}', space=vmem, size = 0x2000, scoped, tag = 'output window, operand 0, single buffered']
    #allocation10 [shape = 'u8[8192]{0}', space=vmem, size = 0x2000, scoped, tag = 'output window, operand 1, single buffered']
    #allocation11 [shape = 's32[1]{0}', space=sflag, size = 0x4, scoped, tag = 'scoped memory for tpu_custom_call.1']
    %9 = vsyncpa [#allocation5], 0
    %10 = vsyncpa [#allocation8], 0
    %11 = vsyncpa [#allocation6], 0
    %12 = vsyncpa [#allocation11], 0
    // Predicated region
    $region2: #{tpu_custom_call.1} parent=1 // pred_check
      _
    $region3: #{tpu_custom_call.1} parent=1 // pred_check_branch
      %14 = sbr.rel (0) target = $region5
    $region4: #{tpu_custom_call.1} parent=1 // pred_region
      %16 = vsyncadd [#allocation5], 0
      %s17 = sshll.u32 %s0, 4
      %s18 = int_to_ptr.hbm [resolvable:$true] %s17
      %s19 = sshll.u32 [#allocation4], 4
      %s20 = int_to_ptr.vmem [resolvable:$true] %s19
      %25 = dma.hbm_to_vmem [thread:$0]  %s18, 256, %s20, [#allocation5], 128, 128, 8
    $region5: #{tpu_custom_call.1} parent=1 // pred_fallthru
      _
    // Predicated region
    $region6: #{tpu_custom_call.1} parent=1 // pred_check
      _
    $region7: #{tpu_custom_call.1} parent=1 // pred_check_branch
      %27 = sbr.rel (0) target = $region9
    $region8: #{tpu_custom_call.1} parent=1 // pred_region
      %29 = vsyncadd [#allocation8], 0
      %s30 = sshll.u32 %s1, 4
      %s31 = int_to_ptr.hbm [resolvable:$true] %s30
      %s32 = sshll.u32 [#allocation7], 4
      %s33 = int_to_ptr.vmem [resolvable:$true] %s32
      %38 = dma.hbm_to_vmem [thread:$0]  %s31, 256, %s33, [#allocation8], 128, 128, 8
    $region9: #{tpu_custom_call.1} parent=1 // pred_fallthru
      _
    // Predicated region
    $region10: #{tpu_custom_call.1} parent=1 // pred_check
      _
    $region11: #{tpu_custom_call.1} parent=1 // pred_check_branch
      %40 = sbr.rel (0) target = $region13
    $region12: #{tpu_custom_call.1} parent=1 // pred_region
      %42 = dma.done [#allocation5], 256
    $region13: #{tpu_custom_call.1} parent=1 // pred_fallthru
      _
    // Predicated region
    $region14: #{tpu_custom_call.1} parent=1 // pred_check
      _
    $region15: #{tpu_custom_call.1} parent=1 // pred_check_branch
      %44 = sbr.rel (0) target = $region17
    $region16: #{tpu_custom_call.1} parent=1 // pred_region
      %46 = dma.done [#allocation8], 256
    $region17: #{tpu_custom_call.1} parent=1 // pred_fallthru
      _
    %p47 = scmp.eq.s32.totalorder 0, 0
    // Predicated region
    $region18: #{tpu_custom_call.1} parent=1 // pred_check
      %p48 = pneg %p47
    $region19: #{tpu_custom_call.1} parent=1 // pred_check_branch
      %50 = sbr.rel (%p48) target = $region21
    $region20: #{tpu_custom_call.1} parent=1 // pred_region
      %51 = vst [vmem:[#allocation2] sm:$0xff] 0.0
      %52 = vst [vmem:[#allocation2 + $0x8] sm:$0xff] 0.0
      %53 = vst [vmem:[#allocation3] sm:$0xff] 0.0
      %54 = vst [vmem:[#allocation3 + $0x8] sm:$0xff] 0.0
    $region21: #{tpu_custom_call.1} parent=1 // pred_fallthru
      _
    %v55 = vld [vmem:[#allocation4] sm:$0xff]
    %v56 = vld [vmem:[#allocation4 + $0x8] sm:$0xff]
    %v57 = vld [vmem:[#allocation7] sm:$0xff]
    %v58 = vld [vmem:[#allocation7 + $0x8] sm:$0xff]
    %v59 = vld [vmem:[#allocation2] sm:$0xff]
    %v60 = vld [vmem:[#allocation2 + $0x8] sm:$0xff]
    %v61 = vmul.f32 %v55, %v57
    %v62 = vmul.f32 %v56, %v58
    %v63 = vadd.f32 %v59, %v61
    %v64 = vadd.f32 %v60, %v62
    %65 = vst [vmem:[#allocation2] sm:$0xff] %v63
    %66 = vst [vmem:[#allocation2 + $0x8] sm:$0xff] %v64
    %v67 = vld [vmem:[#allocation3] sm:$0xff]
    %v68 = vld [vmem:[#allocation3 + $0x8] sm:$0xff]
    %v69 = vmul.f32 %v55, %v55
    %v70 = vmul.f32 %v56, %v56
    %v71 = vmul.f32 %v57, %v57
    %v72 = vmul.f32 %v58, %v58
    %v73 = vadd.f32 %v69, %v71
    %v74 = vadd.f32 %v70, %v72
    %v75 = vadd.f32 %v67, %v73
    %v76 = vadd.f32 %v68, %v74
    %77 = vst [vmem:[#allocation3] sm:$0xff] %v75
    %78 = vst [vmem:[#allocation3 + $0x8] sm:$0xff] %v76
    // Predicated region
    $region22: #{tpu_custom_call.1} parent=1 // pred_check
      %p79 = pneg %p47
    $region23: #{tpu_custom_call.1} parent=1 // pred_check_branch
      %81 = sbr.rel (%p79) target = $region25
    $region24: #{tpu_custom_call.1} parent=1 // pred_region
      %v82 = vld [vmem:[#allocation2] sm:$0xff]
      %v83 = vld [vmem:[#allocation2 + $0x8] sm:$0xff]
      %v84 = vld [vmem:[#allocation3] sm:$0xff]
      %v85 = vld [vmem:[#allocation3 + $0x8] sm:$0xff]
      %86 = vst [vmem:[#allocation9] sm:$0xff] %v82
      %87 = vst [vmem:[#allocation9 + $0x8] sm:$0xff] %v83
      %88 = vst [vmem:[#allocation10] sm:$0xff] %v84
      %89 = vst [vmem:[#allocation10 + $0x8] sm:$0xff] %v85
    $region25: #{tpu_custom_call.1} parent=1 // pred_fallthru
      _
    // Predicated region
    $region26: #{tpu_custom_call.1} parent=1 // pred_check
      _
    $region27: #{tpu_custom_call.1} parent=1 // pred_check_branch
      %91 = sbr.rel (0) target = $region29
    $region28: #{tpu_custom_call.1} parent=1 // pred_region
      %93 = vsyncadd [#allocation6], 0
      %s94 = sshll.u32 [#allocation9], 4
      %s95 = int_to_ptr.vmem [resolvable:$true] %s94
      %s96 = sshll.u32 %s2, 4
      %s97 = int_to_ptr.hbm [resolvable:$true] %s96
      %102 = dma.vmem_to_hbm [thread:$0]  %s95, 256, %s97, [#allocation6], 128, 128, 8
    $region29: #{tpu_custom_call.1} parent=1 // pred_fallthru
      _
    // Predicated region
    $region30: #{tpu_custom_call.1} parent=1 // pred_check
      _
    $region31: #{tpu_custom_call.1} parent=1 // pred_check_branch
      %104 = sbr.rel (0) target = $region33
    $region32: #{tpu_custom_call.1} parent=1 // pred_region
      %106 = vsyncadd [#allocation11], 0
      %s107 = sshll.u32 [#allocation10], 4
      %s108 = int_to_ptr.vmem [resolvable:$true] %s107
      %s109 = sshll.u32 %s3, 4
      %s110 = int_to_ptr.hbm [resolvable:$true] %s109
      %115 = dma.vmem_to_hbm [thread:$0]  %s108, 256, %s110, [#allocation11], 128, 128, 8
    $region33: #{tpu_custom_call.1} parent=1 // pred_fallthru
      _
    // Predicated region
    $region34: #{tpu_custom_call.1} parent=1 // pred_check
      _
    $region35: #{tpu_custom_call.1} parent=1 // pred_check_branch
      %117 = sbr.rel (0) target = $region37
    $region36: #{tpu_custom_call.1} parent=1 // pred_region
      %119 = dma.done [#allocation6], 256
    $region37: #{tpu_custom_call.1} parent=1 // pred_fallthru
      _
    // Predicated region
    $region38: #{tpu_custom_call.1} parent=1 // pred_check
      _
    $region39: #{tpu_custom_call.1} parent=1 // pred_check_branch
      %121 = sbr.rel (0) target = $region41
    $region40: #{tpu_custom_call.1} parent=1 // pred_region
      %123 = dma.done [#allocation11], 256
    $region41: #{tpu_custom_call.1} parent=1 // pred_fallthru
      _
    %124 = vsyncpa [#allocation5], 1
    %125 = vsyncpa [#allocation8], 1
    %126 = vsyncpa [#allocation6], 1
    %127 = vsyncpa [#allocation11], 1

</llo_original>
